<compile_context>
chip_gen: v7x
topology: tpu7x:2x2x1
jax: 0.10.0
libtpu: 0.0.40
codegen_flags: <defaults>
</compile_context>

<pallas_src>
import functools
import math

import jax
import jax.numpy as jnp
from jax.experimental import pallas as pl
from jax.experimental.pallas import tpu as pltpu


_LANE = 128
_PE_SHARED_MAX_BYTES = 8 * 1024 * 1024      # keep the full PE slab resident in VMEM below this
_DEFAULT_TILE_TARGET = 6 * 1024 * 1024      # ~6 MiB x/out tiles (review: >2 MiB is the big lever)
_VMEM_LIMIT_BYTES = 48 * 1024 * 1024        # safe on v7x (64 MiB physical); raises v5e/v6e defaults
_DEFAULT_XLA_BYPASS_BYTES = 1 * 1024 * 1024  # below this, plain XLA add wins


def make_sinusoidal_pe(d_model: int, max_len: int = 5000, dtype=jnp.float32):
    """Deterministic buffer init, same math as the PyTorch __init__ (not the hot path)."""
    position = jnp.arange(max_len, dtype=jnp.float32)[:, None]                 # (max_len, 1)
    div_term = jnp.exp(jnp.arange(0, d_model, 2, dtype=jnp.float32)
                       * -(math.log(10000.0) / d_model))                       # (d_model/2,)
    pe = jnp.zeros((max_len, d_model), dtype=jnp.float32)
    pe = pe.at[:, 0::2].set(jnp.sin(position * div_term))
    pe = pe.at[:, 1::2].set(jnp.cos(position * div_term))
    return pe.astype(dtype)                                                    # (max_len, d_model)


def _add_pe_tiled_kernel(x_ref, pe_ref, o_ref):
    # x_ref / pe_ref / o_ref: (tr, cols) — PE tile DMA'd per row tile (batch-invariant index).
    o_ref[...] = x_ref[...] + pe_ref[...]


def _add_pe_shared_kernel(x_ref, pe_ref, o_ref, *, tile_rows):
    # x_ref / o_ref: (tr, cols).  pe_ref: (rows, cols) full PE slab, resident in VMEM
    # (constant block index -> fetched once, never re-DMA'd per step).
    start = pl.multiple_of(pl.program_id(0) * tile_rows, tile_rows)
    o_ref[...] = x_ref[...] + pe_ref[pl.ds(start, tile_rows), :]


def _sublane_for_dtype(dtype) -> int:
    size = jnp.dtype(dtype).itemsize
    if size >= 4:
        return 8
    if size == 2:
        return 16
    return 32


def _pick_tile_rows(rows: int, cols: int, itemsize: int, sublane: int,
                    target_bytes: int) -> int:
    """Row count for one (tr, cols) tile.

    Preference order:
      a) the whole extent when it fits the byte target,
      b) the largest divisor of `rows` that is a sublane multiple and fits
         (no ragged edge tile -> no masked edge stores / wasted pipeline step),
      c) the sublane-aligned cap (ragged edge handled by Pallas block clipping).
    """
    cap = max(sublane, target_bytes // max(1, cols * itemsize))
    if rows <= cap:
        return int(rows)
    if rows % sublane == 0:
        r = rows // sublane
        best = 0
        d = 1
        while d * d <= r:
            if r % d == 0:
                for q in (d, r // d):
                    t = q * sublane
                    if best < t <= cap:
                        best = t
            d += 1
        if best >= sublane:
            return int(best)
    return int(max(sublane, (cap // sublane) * sublane))


def sinusoidal_positional_encoding(
    x: jax.Array,
    pe_table: jax.Array,
    *,
    tile_target_bytes: int = _DEFAULT_TILE_TARGET,
    min_pallas_bytes: int = _DEFAULT_XLA_BYPASS_BYTES,
) -> jax.Array:
    """x: (B, S, D). Adds pe_table[:S] to every batch element."""
    b, s, d = x.shape
    if s > pe_table.shape[0]:
        raise ValueError(f"seq_len={s} exceeds max_len={pe_table.shape[0]} of the PE table")

    # Note: PyTorch adds a float32 buffer (promoting half/bf16 x to f32); we keep
    # x.dtype instead, which halves PE DMA bytes and avoids per-element VPU casts.
    pe = pe_table[:s].astype(x.dtype)          # (S, D) static slice, dtype-matched
    itemsize = jnp.dtype(x.dtype).itemsize

    # Tiny-input bypass: fixed pallas_call + per-step overhead dominates; the XLA
    # fused add is already at roofline for such sizes.
    if b * s * d * itemsize < min_pallas_bytes:
        return x + pe[None]

    sublane = _sublane_for_dtype(x.dtype)

    # Lane-dense view: flatten (S, D) per batch element to (rows, 128) when possible
    # so output stores are full-lane (no masked vst.msk when d_model < 128).
    n = s * d
    if n % _LANE == 0:
        rows, cols = n // _LANE, _LANE
        x_v = x.reshape(b, rows, cols)
        pe_v = pe.reshape(rows, cols)
    else:
        # TODO(synk): when d < 128 this path issues masked stores; wrapper-side
        # padding of d to 128 (when close) would remove the cliff at extra bytes.
        rows, cols = s, d
        x_v = x
        pe_v = pe

    tr = _pick_tile_rows(rows, cols, itemsize, sublane, tile_target_bytes)
    exact = (rows % tr == 0)
    num_row_tiles = rows // tr if exact else pl.cdiv(rows, tr)
    pe_bytes = rows * cols * itemsize

    # Grid: row tiles outer, batch inner (PE block index constant along the inner
    # axis).  Both axes "parallel" so v7x megacore can shard whichever is larger.
    grid = (num_row_tiles, b)

    # Leading batch dim squeezed (None) -> kernel sees (tr, cols) tiles, same rank as PE.
    x_spec = pl.BlockSpec((None, tr, cols), lambda j, i: (i, j, 0))
    out_spec = pl.BlockSpec((None, tr, cols), lambda j, i: (i, j, 0))

    pe_shared = exact and (pe_bytes <= _PE_SHARED_MAX_BYTES)
    if pe_shared:
        # Full PE slab resident in VMEM; slice per row tile inside the kernel.
        kernel = functools.partial(_add_pe_shared_kernel, tile_rows=tr)
        pe_spec = pl.BlockSpec((rows, cols), lambda j, i: (0, 0))
    else:
        # Per-row-tile PE blocks (batch-invariant index map); handles ragged rows
        # (edge clipping) and very large PE tables.
        kernel = _add_pe_tiled_kernel
        pe_spec = pl.BlockSpec((tr, cols), lambda j, i: (j, 0))

    out_v = pl.pallas_call(
        kernel,
        out_shape=jax.ShapeDtypeStruct((b, rows, cols), x.dtype),
        grid_spec=pltpu.PrefetchScalarGridSpec(
            num_scalar_prefetch=0,
            grid=grid,
            in_specs=[x_spec, pe_spec],
            out_specs=out_spec,
        ),
        compiler_params=pltpu.CompilerParams(
            dimension_semantics=("parallel", "parallel"),
            vmem_limit_bytes=_VMEM_LIMIT_BYTES,
        ),
        cost_estimate=pl.CostEstimate(
            flops=b * s * d,
            transcendentals=0,
            bytes_accessed=(2 * b * s * d + s * d) * itemsize,
        ),
    )(x_v, pe_v)

    return out_v.reshape(b, s, d)


if __name__ == "__main__":
    key = jax.random.PRNGKey(0)
    max_len = 64

    # 1) Lane-dense path (S*D % 128 == 0), Pallas forced on a small shape.
    d_model, seq_len, batch = 32, 8, 2
    x = jax.random.normal(key, (batch, seq_len, d_model), dtype=jnp.float32)
    pe_table = make_sinusoidal_pe(d_model, max_len)
    out = jax.block_until_ready(
        sinusoidal_positional_encoding(x, pe_table, min_pallas_bytes=0))
    ref = x + pe_table[None, :seq_len, :]
    assert out.shape == x.shape
    assert jnp.allclose(out, ref, atol=1e-6), "mismatch (lane-dense shared-PE path)"

    # 2) Non-lane-dense fallback path (S*D % 128 != 0, d < 128).
    d2, s2 = 24, 5
    x2 = jax.random.normal(jax.random.PRNGKey(1), (batch, s2, d2), dtype=jnp.float32)
    pe2 = make_sinusoidal_pe(d2, max_len)
    out2 = jax.block_until_ready(
        sinusoidal_positional_encoding(x2, pe2, min_pallas_bytes=0))
    assert jnp.allclose(out2, x2 + pe2[None, :s2, :], atol=1e-6), "mismatch (fallback path)"

    # 3) Multi-row-tile shared-PE path (tiny tile target forces grid=(4, 2) and
    #    in-kernel pl.ds slicing of the resident PE slab).
    d3, s3 = 64, 64
    x3 = jax.random.normal(jax.random.PRNGKey(2), (batch, s3, d3), dtype=jnp.float32)
    pe3 = make_sinusoidal_pe(d3, max_len)
    out3 = jax.block_until_ready(
        sinusoidal_positional_encoding(x3, pe3, min_pallas_bytes=0,
                                       tile_target_bytes=4096))
    assert jnp.allclose(out3, x3 + pe3[None, :s3, :], atol=1e-6), "mismatch (multi-tile path)"

    # 4) Ragged tiled-PE path (rows not a sublane multiple -> edge block clipping).
    d4, s4 = 24, 20
    x4 = jax.random.normal(jax.random.PRNGKey(3), (batch, s4, d4), dtype=jnp.float32)
    pe4 = make_sinusoidal_pe(d4, max_len)
    out4 = jax.block_until_ready(
        sinusoidal_positional_encoding(x4, pe4, min_pallas_bytes=0,
                                       tile_target_bytes=1024))
    assert jnp.allclose(out4, x4 + pe4[None, :s4, :], atol=1e-6), "mismatch (ragged tiled path)"

    # 5) Tiny-input XLA bypass (default threshold) — no Pallas launch.
    out5 = jax.block_until_ready(sinusoidal_positional_encoding(x, pe_table))
    assert jnp.allclose(out5, ref, atol=1e-6), "mismatch (XLA bypass path)"

    print("KERNEL_OK")
</pallas_src>

<mosaic_0001>
module attributes {stable_mosaic.version = 11 : i64} {
  func.func @_add_pe_shared_kernel(%arg0: i32, %arg1: i32, %arg2: memref<1x2x128xf32, #tpu.memory_space<vmem>>, %arg3: memref<2x128xf32, #tpu.memory_space<vmem>>, %arg4: memref<1x2x128xf32, #tpu.memory_space<vmem>>) attributes {dimension_semantics = [#tpu.dimension_semantics<parallel>, #tpu.dimension_semantics<parallel>], iteration_bounds = array<i64: 1, 2>, scalar_prefetch = 0 : i64, scratch_operands = 0 : i64, tpu.core_type = #tpu.core_type<tc>, window_params = [{transform_indices = @transform_0, window_bounds = array<i64: 1, 2, 128>}, {pipeline_mode = #tpu.pipeline_mode<synchronous>, transform_indices = @transform_1, window_bounds = array<i64: 2, 128>}, {transform_indices = @transform_2, window_bounds = array<i64: 1, 2, 128>}]} {
    %c2_i32 = arith.constant 2 : i32
    %0 = arith.muli %arg0, %c2_i32 : i32
    %1 = tpu.assume_multiple %0, 2 : i32
    %c0 = arith.constant 0 : index
    %c0_0 = arith.constant 0 : index
    %c0_1 = arith.constant 0 : index
    %2 = vector.load %arg2[%c0, %c0_0, %c0_1] : memref<1x2x128xf32, #tpu.memory_space<vmem>>, vector<1x2x128xf32>
    %3 = vector.shape_cast %2 : vector<1x2x128xf32> to vector<2x128xf32>
    %4 = arith.index_cast %1 : i32 to index
    %c0_2 = arith.constant 0 : index
    %5 = vector.load %arg3[%4, %c0_2] : memref<2x128xf32, #tpu.memory_space<vmem>>, vector<2x128xf32>
    %6 = arith.addf %3, %5 : vector<2x128xf32>
    %c0_3 = arith.constant 0 : index
    %c0_4 = arith.constant 0 : index
    %c0_5 = arith.constant 0 : index
    %7 = vector.load %arg4[%c0_3, %c0_4, %c0_5] : memref<1x2x128xf32, #tpu.memory_space<vmem>>, vector<1x2x128xf32>
    %8 = vector.shape_cast %7 : vector<1x2x128xf32> to vector<2x128xf32>
    %9 = vector.shape_cast %6 : vector<2x128xf32> to vector<1x2x128xf32>
    tpu.vector_store %arg4[%c0_3, %c0_4, %c0_5], %9 {strides = array<i32>} : memref<1x2x128xf32, #tpu.memory_space<vmem>>, vector<1x2x128xf32>,
    return
  }
  func.func @transform_0(%arg0: i32, %arg1: i32) -> (i32, i32, i32) {
    %c0_i32 = arith.constant 0 : i32
    %c0_i32_0 = arith.constant 0 : i32
    return %arg1, %arg0, %c0_i32 : i32, i32, i32
  }
  func.func @transform_1(%arg0: i32, %arg1: i32) -> (i32, i32) {
    %c0_i32 = arith.constant 0 : i32
    %c0_i32_0 = arith.constant 0 : i32
    %c0_i32_1 = arith.constant 0 : i32
    return %c0_i32, %c0_i32_0 : i32, i32
  }
  func.func @transform_2(%arg0: i32, %arg1: i32) -> (i32, i32, i32) {
    %c0_i32 = arith.constant 0 : i32
    %c0_i32_0 = arith.constant 0 : i32
    return %arg1, %arg0, %c0_i32 : i32, i32, i32
  }
}

</mosaic_0001>

<llo_original>
// kernel: tpu_custom_call.1
$region0: #{tpu_custom_call.1}
  #allocation0 [shape = 'u32[]', space=smem, size = 0x4, offset = 0x4, fixed_abs, tag = 'smem constant byte address 0x4 - core index']
  #allocation1 [shape = 'u32[144,128]{1,0:T(1,128)}', space=vmem, size = 0x12000, scoped, tag = 'internal scratch']
  %s0 = inlined_call_operand.hbm [shape: f32[2,2,128], index: 0, kind: input, shape index: {}]
  %s1 = inlined_call_operand.vmem [shape: f32[2,128], index: 1, kind: input, shape index: {}]
  %s2 = inlined_call_operand.hbm [shape: f32[2,2,128], index: 2, kind: output, shape index: {}]
  %s3 = sld [smem:[#allocation0]]
  $region45: #{tpu_custom_call.1} parent=0
    _
  %s5 = ssub.s32 1, %s3
  %s6 = scalar_select 0, %s5, %s3
  $region1: #{tpu_custom_call.1} parent=0
    #allocation2 [shape = 'u8[2048]{0}', space=vmem, size = 0x800, scoped, tag = 'input window, operand 0']
    #allocation3 [shape = 's32[2]{0}', space=sflag, size = 0x8, scoped, tag = 'scoped memory for tpu_custom_call.1']
    #allocation4 [shape = 's32[2]{0}', space=sflag, size = 0x8, scoped, tag = 'scoped memory for tpu_custom_call.1']
    #allocation5 [shape = 'u8[2048]{0}', space=vmem, size = 0x800, scoped, tag = 'output window, operand 0']
    %7 = vsyncpa [#allocation3], 0
    %s8 = scalar_lea.sflag [#allocation3], 1
    %9 = vsyncpa %s8, 0
    %10 = vsyncpa [#allocation4], 0
    %s11 = scalar_lea.sflag [#allocation4], 1
    %12 = vsyncpa %s11, 0
    loop: start=0, step=1, limit=4
    $region2: #{tpu_custom_call.1} parent=1 // loop_pre_header
      _
    $region3: #{tpu_custom_call.1} parent=1 // loop_header
      %s14 = sphi 0, %s18
      %p15 = scmp.ge.s32.totalorder %s14, 4
      %s21 = sphi 0, %s33
      %s22 = sphi 0, %s29
      %s23 = sphi 0, %s21
      %s24 = sphi 0, %s22
      %s25 = sphi 0, %s23
      %s26 = sphi 0, %s24
      %s38 = sphi 0, %s40
      %s41 = sphi 0, %s38
      %s42 = sphi 0, %s41
      %s58 = sphi 0, %s42
      %s62 = sphi 0, %s62
      %s64 = sphi 0, %s62
      %s65 = sphi 0, %s64
      %s79 = sphi 0, %s65
      %s87 = sphi 0, %s89
      %s90 = sphi 0, %s87
      %s91 = sphi 0, %s90
      %s107 = sphi 0, %s91
    $region4: #{tpu_custom_call.1} parent=1 // loop_header_branch
      %17 = sbr.rel (%p15) target = $region8
    $region5: #{tpu_custom_call.1} parent=1 // loop_body
      %s19 = ssub.s32 %s14, 1
      %s20 = ssub.s32 %s14, 2
      %s27 = sadd.s32 1, %s22
      %p28 = scmp.ge.s32.totalorder %s27, 2
      %s29 = scalar_select %p28, 0, %s27
      %s30 = sadd.s32 1, %s21
      %s31 = scalar_select %p28, %s30, %s21
      %p32 = scmp.ge.s32.totalorder %s31, 1
      %s33 = scalar_select %p32, 0, %s31
      %s34 = ssub.s32 %s22, %s29
      %s35 = ssub.s32 %s21, %s33
      %s36 = sor.u32 %s34, %s35
      %p37 = scmp.eq.s32.totalorder %s36, 0
      %s39 = sadd.s32 %s38, 1
      %s40 = scalar_select %p37, %s38, %s39
      %p43 = pneg %p37
      %p44 = scmp.eq.s32.totalorder %s14, 1
      %p45 = por %p43, %p44
      %p46 = scmp.ne.s32.totalorder %s38, %s41
      %p47 = scmp.eq.s32.totalorder %s14, 0
      %p48 = por %p46, %p47
      %p49 = scmp.ne.s32.totalorder %s38, %s41
      %p50 = scmp.eq.s32.totalorder %s19, 1
      %p51 = por %p49, %p50
      %p52 = scmp.ne.s32.totalorder %s41, %s42
      %p53 = scmp.eq.s32.totalorder %s19, 0
      %p54 = por %p52, %p53
      %p55 = scmp.ne.s32.totalorder %s41, %s42
      %p56 = scmp.eq.s32.totalorder %s20, 1
      %p57 = por %p55, %p56
      %p59 = scmp.ne.s32.totalorder %s42, %s58
      %p60 = scmp.eq.s32.totalorder %s20, 0
      %p61 = por %p59, %p60
      %s63 = sadd.s32 %s62, 1
      %p66 = scmp.eq.s32.totalorder %s14, 1
      %p67 = scmp.ne.s32.totalorder %s62, %s64
      %p68 = scmp.eq.s32.totalorder %s14, 0
      %p69 = por %p67, %p68
      %p70 = scmp.ne.s32.totalorder %s62, %s64
      %p71 = scmp.eq.s32.totalorder %s19, 1
      %p72 = por %p70, %p71
      %p73 = scmp.ne.s32.totalorder %s64, %s65
      %p74 = scmp.eq.s32.totalorder %s19, 0
      %p75 = por %p73, %p74
      %p76 = scmp.ne.s32.totalorder %s64, %s65
      %p77 = scmp.eq.s32.totalorder %s20, 1
      %p78 = por %p76, %p77
      %p80 = scmp.ne.s32.totalorder %s65, %s79
      %p81 = scmp.eq.s32.totalorder %s20, 0
      %p82 = por %p80, %p81
      %s83 = ssub.s32 %s22, %s29
      %s84 = ssub.s32 %s21, %s33
      %s85 = sor.u32 %s83, %s84
      %p86 = scmp.eq.s32.totalorder %s85, 0
      %s88 = sadd.s32 %s87, 1
      %s89 = scalar_select %p86, %s87, %s88
      %p92 = pneg %p86
      %p93 = scmp.eq.s32.totalorder %s14, 1
      %p94 = por %p92, %p93
      %p95 = scmp.ne.s32.totalorder %s87, %s90
      %p96 = scmp.eq.s32.totalorder %s14, 0
      %p97 = por %p95, %p96
      %p98 = scmp.ne.s32.totalorder %s87, %s90
      %p99 = scmp.eq.s32.totalorder %s19, 1
      %p100 = por %p98, %p99
      %p101 = scmp.ne.s32.totalorder %s90, %s91
      %p102 = scmp.eq.s32.totalorder %s19, 0
      %p103 = por %p101, %p102
      %p104 = scmp.ne.s32.totalorder %s90, %s91
      %p105 = scmp.eq.s32.totalorder %s20, 1
      %p106 = por %p104, %p105
      %p108 = scmp.ne.s32.totalorder %s91, %s107
      %p109 = scmp.eq.s32.totalorder %s20, 0
      %p110 = por %p108, %p109
      %p111 = scmp.le.s32.totalorder 1, %s14
      %p112 = scmp.lt.s32.totalorder %s14, 3
      %p113 = pnand %p111, %p112
      %p114 = pneg %p113
      // Predicated region
      $region9: #{tpu_custom_call.1} parent=5 // pred_check
        _
      $region10: #{tpu_custom_call.1} parent=5 // pred_check_branch
        %116 = sbr.rel (%p113) target = $region12
      $region11: #{tpu_custom_call.1} parent=5 // pred_region
        %s117 = ssub.s32 %s14, 1
        // Predicated region
        $region13: #{tpu_custom_call.1} parent=11 // pred_check
          %p118 = pneg %p75
        $region14: #{tpu_custom_call.1} parent=11 // pred_check_branch
          %120 = sbr.rel (%p118) target = $region16
        $region15: #{tpu_custom_call.1} parent=11 // pred_region
          _
        $region16: #{tpu_custom_call.1} parent=11 // pred_fallthru
          _
      $region12: #{tpu_custom_call.1} parent=5 // pred_fallthru
        _
      %p121 = scmp.lt.s32.totalorder %s14, 2
      // Predicated region
      $region17: #{tpu_custom_call.1} parent=5 // pred_check
        %p122 = pneg %p121
      $region18: #{tpu_custom_call.1} parent=5 // pred_check_branch
        %124 = sbr.rel (%p122) target = $region20
      $region19: #{tpu_custom_call.1} parent=5 // pred_region
        // Predicated region
        $region21: #{tpu_custom_call.1} parent=19 // pred_check
          %p125 = pneg %p48
        $region22: #{tpu_custom_call.1} parent=19 // pred_check_branch
          %127 = sbr.rel (%p125) target = $region24
        $region23: #{tpu_custom_call.1} parent=19 // pred_region
          %s128 = sand.u32 %s38, 1
          %s129 = scalar_lea.sflag [#allocation3], %s128
          %s130 = sand.u32 %s38, 1
          %s131 = smul.addr %s130, 2
          %s132 = scalar_lea.vmem [#allocation2], %s131
          %s134 = ssub.s32 32, 32
          %135 = vsyncadd %s129, %s134
          %s136 = sadd.s32 %s21, %s22
          %s137 = smul.addr %s136, 32
          %s138 = scalar_lea.hbm %s0, %s137
          %s140 = sshll.u32 %s132, 4
          %s141 = int_to_ptr.vmem [resolvable:$true] %s140
          %143 = dma.hbm_to_vmem [thread:$0]  %s138, 32, %s141, %s129
        $region24: #{tpu_custom_call.1} parent=19 // pred_fallthru
          _
      $region20: #{tpu_custom_call.1} parent=5 // pred_fallthru
        _
      %p144 = scmp.le.s32.totalorder 1, %s14
      %p145 = scmp.lt.s32.totalorder %s14, 3
      %p146 = pnand %p144, %p145
      %p147 = pneg %p146
      // Predicated region
      $region25: #{tpu_custom_call.1} parent=5 // pred_check
        _
      $region26: #{tpu_custom_call.1} parent=5 // pred_check_branch
        %149 = sbr.rel (%p146) target = $region28
      $region27: #{tpu_custom_call.1} parent=5 // pred_region
        %s150 = ssub.s32 %s14, 1
        %s151 = sand.u32 %s41, 1
        %s152 = scalar_lea.sflag [#allocation3], %s151
        %s153 = sand.u32 %s41, 1
        %s154 = smul.addr %s153, 2
        %s155 = scalar_lea.vmem [#allocation2], %s154
        // Predicated region
        $region29: #{tpu_custom_call.1} parent=27 // pred_check
          %p156 = pneg %p54
        $region30: #{tpu_custom_call.1} parent=27 // pred_check_branch
          %158 = sbr.rel (%p156) target = $region32
        $region31: #{tpu_custom_call.1} parent=27 // pred_region
          %159 = dma.done %s152, 32
        $region32: #{tpu_custom_call.1} parent=27 // pred_fallthru
          _
        %s160 = sand.u32 %s41, 1
        %s161 = scalar_lea.sflag [#allocation3], %s160
        %s162 = sand.u32 %s41, 1
        %s163 = smul.addr %s162, 2
        %s164 = scalar_lea.vmem [#allocation2], %s163
        %p165 = pneg %p54
        %p166 = pneg %p51
        %p167 = pneg %p75
        %p168 = pneg %p72
        %p169 = pneg %p103
        %p170 = pneg %p100
        %s171 = sand.u32 %s90, 1
        %s172 = scalar_lea.sflag [#allocation4], %s171
        %s173 = sand.u32 %s90, 1
        %s174 = smul.addr %s173, 2
        %s175 = scalar_lea.vmem [#allocation5], %s174
        %s176 = smul.u32 %s23, 2
        %v177 = vld [vmem:[%s155] sm:$0x3]
        %s178 = scalar_lea.vmem %s1, %s176
        %v179 = vld [vmem:[%s178] sm:$0x3]
        %v180 = vadd.f32 %v177, %v179
        %181 = vst [vmem:[%s175] sm:$0x3] %v180
        %s182 = sand.u32 %s90, 1
        %s183 = scalar_lea.sflag [#allocation4], %s182
        %s184 = sand.u32 %s90, 1
        %s185 = smul.addr %s184, 2
        %s186 = scalar_lea.vmem [#allocation5], %s185
        // Predicated region
        $region33: #{tpu_custom_call.1} parent=27 // pred_check
          %p187 = pneg %p100
        $region34: #{tpu_custom_call.1} parent=27 // pred_check_branch
          %189 = sbr.rel (%p187) target = $region36
        $region35: #{tpu_custom_call.1} parent=27 // pred_region
          %s191 = ssub.s32 32, 32
          %192 = vsyncadd %s183, %s191
          %s193 = sadd.s32 %s23, %s24
          %s194 = smul.addr %s193, 32
          %s195 = scalar_lea.hbm %s2, %s194
          %s197 = sshll.u32 %s186, 4
          %s198 = int_to_ptr.vmem [resolvable:$true] %s197
          %200 = dma.vmem_to_hbm [thread:$0]  %s198, 32, %s195, %s183
        $region36: #{tpu_custom_call.1} parent=27 // pred_fallthru
          _
      $region28: #{tpu_custom_call.1} parent=5 // pred_fallthru
        _
      %p201 = scmp.le.s32.totalorder 2, %s14
      // Predicated region
      $region37: #{tpu_custom_call.1} parent=5 // pred_check
        %p202 = pneg %p201
      $region38: #{tpu_custom_call.1} parent=5 // pred_check_branch
        %204 = sbr.rel (%p202) target = $region40
      $region39: #{tpu_custom_call.1} parent=5 // pred_region
        %s205 = ssub.s32 %s14, 2
        // Predicated region
        $region41: #{tpu_custom_call.1} parent=39 // pred_check
          %p206 = pneg %p106
        $region42: #{tpu_custom_call.1} parent=39 // pred_check_branch
          %208 = sbr.rel (%p206) target = $region44
        $region43: #{tpu_custom_call.1} parent=39 // pred_region
          %s209 = sand.u32 %s91, 1
          %s210 = scalar_lea.sflag [#allocation4], %s209
          %s211 = sand.u32 %s91, 1
          %s212 = smul.addr %s211, 2
          %s213 = scalar_lea.vmem [#allocation5], %s212
          %214 = dma.done %s210, 32
        $region44: #{tpu_custom_call.1} parent=39 // pred_fallthru
          _
      $region40: #{tpu_custom_call.1} parent=5 // pred_fallthru
        _
    $region6: #{tpu_custom_call.1} parent=1 // loop_footer
      %s18 = sadd.s32 1, %s14
    $region7: #{tpu_custom_call.1} parent=1 // loop_footer_branch
      %13 = sbr.rel target = $region3
    $region8: #{tpu_custom_call.1} parent=1 // loop_exit
      _
    %215 = vsyncpa [#allocation3], 1
    %s216 = scalar_lea.sflag [#allocation3], 1
    %217 = vsyncpa %s216, 1
    %218 = vsyncpa [#allocation4], 1
    %s219 = scalar_lea.sflag [#allocation4], 1
    %220 = vsyncpa %s219, 1

</llo_original>
